<compile_context>
chip_gen: v5e
topology: v5e:2x2
jax: 0.10.0
libtpu: 0.0.40
codegen_flags: <defaults>
</compile_context>

<pallas_src>
import functools

import jax
import jax.numpy as jnp
from jax.experimental import pallas as pl
from jax.experimental.pallas import tpu as pltpu

PAD_token = 1


def ek_forward_kernel(m_story_ref, gp_ref, q_ref,
                      prob_soft_ref, prob_logits_ref, *, max_hops):
    """All hops for one batch tile.

    m_story_ref : (H+1, TB, M, E)  VMEM, bfloat16
    gp_ref      : (TB, M)          VMEM, float32
    q_ref       : (TB, E)          VMEM, float32
    outputs     : (TB, M) prob_soft / prob_logits of the LAST hop
    """
    gp = gp_ref[...]                                  # (TB, M) f32
    q = q_ref[...]                                    # (TB, E) f32

    soft = None
    logits = None
    for hop in range(max_hops):                       # static, tiny trip count
        # prob_logits = gp * <m_story[hop], q>_E   (global-pointer fold, MXU).
        # Index the ref per use (no cross-hop carry -> bounded vreg live range).
        m_a = m_story_ref[hop].astype(jnp.float32)    # (TB, M, E)
        raw = jnp.einsum('bqe,bme->bqm', q[:, None, :], m_a,
                         preferred_element_type=jnp.float32)[:, 0, :]   # (TB, M)
        logits = gp * raw

        # softmax over the memory axis (exact reciprocal; compute is free here)
        mx = jnp.max(logits, axis=1, keepdims=True)
        ex = jnp.exp(logits - mx)
        soft = ex * pl.reciprocal(jnp.sum(ex, axis=1, keepdims=True))

        # o_k = <gp * prob_soft, m_story[hop+1]>_M   (MXU, f32 accumulate)
        m_c = m_story_ref[hop + 1].astype(jnp.float32)                  # (TB, M, E)
        w = gp * soft                                                   # (TB, M)
        o_k = jnp.einsum('bqm,bme->bqe', w[:, None, :], m_c,
                         preferred_element_type=jnp.float32)[:, 0, :]   # (TB, E)
        q = q + o_k

    prob_soft_ref[...] = soft.astype(prob_soft_ref.dtype)
    prob_logits_ref[...] = logits.astype(prob_logits_ref.dtype)


def external_knowledge_forward(m_story, global_pointer, query_vector, *, max_hops):
    """m_story: (H+1, B, M, E); global_pointer: (B, M); query_vector: (B, E)."""
    Hp1, B, M, E = m_story.shape
    assert Hp1 == max_hops + 1
    f32 = jnp.float32

    # Only large operand -> bf16 transport (DMA halved); small operands stay f32.
    m_story = m_story.astype(jnp.bfloat16)
    gp = global_pointer.astype(f32)
    q = query_vector.astype(f32)

    # ---- Batch tile selection (no padding of any operand). ----
    # Double-buffered m_story tile: 2 * Hp1 * TB * M * E * 2 bytes.  Cap it at
    # ~12 MiB so it fits comfortably on v5e/v6e/v7x without raising the scoped
    # VMEM default; keep TB a multiple of 8 when TB != B (BlockSpec sublane
    # rule) and keep >= 2 grid steps when B > 8 (megacore on v7x).
    row_bytes = Hp1 * M * E * 2
    tile_budget = 12 * 1024 * 1024
    tb_cap = max(1, tile_budget // (2 * row_bytes))
    if B <= 8:
        TB = B                                   # full-extent block, grid may be 1
    else:
        TB = min(256, (tb_cap // 8) * 8, ((pl.cdiv(B, 2) + 7) // 8) * 8)
        TB = max(TB, 8)
    grid = (pl.cdiv(B, TB),)

    kernel = functools.partial(ek_forward_kernel, max_hops=max_hops)
    out_shapes = (
        jax.ShapeDtypeStruct((B, M), f32),       # prob_soft  (last hop)
        jax.ShapeDtypeStruct((B, M), f32),       # prob_logits (last hop)
    )

    grid_spec = pltpu.PrefetchScalarGridSpec(
        num_scalar_prefetch=0,
        grid=grid,
        in_specs=[
            pl.BlockSpec((Hp1, TB, M, E), lambda b: (0, b, 0, 0)),   # m_story (bf16)
            pl.BlockSpec((TB, M), lambda b: (b, 0)),                 # global_pointer
            pl.BlockSpec((TB, E), lambda b: (b, 0)),                 # query_vector
        ],
        out_specs=(
            pl.BlockSpec((TB, M), lambda b: (b, 0)),
            pl.BlockSpec((TB, M), lambda b: (b, 0)),
        ),
    )

    prob_soft, prob_logits = pl.pallas_call(
        kernel,
        out_shape=out_shapes,
        grid_spec=grid_spec,
        compiler_params=pltpu.CompilerParams(
            dimension_semantics=("parallel",),
            vmem_limit_bytes=32 * 1024 * 1024,
        ),
    )(m_story, gp, q)

    return prob_soft, prob_logits


# ---------------- reference (plain JAX, mirrors the PyTorch forward) ----------------
def reference_forward(m_story, global_pointer, query_vector, *, max_hops):
    q = query_vector
    for hop in range(max_hops):
        m_a = m_story[hop] * global_pointer[:, :, None]
        logits = jnp.sum(m_a * q[:, None, :], axis=2)
        soft = jax.nn.softmax(logits, axis=1)
        m_c = m_story[hop + 1] * global_pointer[:, :, None]
        o_k = jnp.sum(m_c * soft[:, :, None], axis=1)
        q = q + o_k
    return soft, logits


if __name__ == "__main__":
    # Small synthetic shapes consistent with the module.
    vocab = 24
    embedding_dim = 32   # E
    max_hops = 3         # H
    B = 2                # batch
    M = 8                # memory length (story rows)
    TOK = 4              # tokens per memory row (MEM_TOKEN_SIZE)

    key = jax.random.PRNGKey(0)
    k_emb, k_story, k_q, k_gp = jax.random.split(key, 4)

    # Embedding tables C_0 .. C_H, init normal(0, 0.1), padding row zeroed.
    emb_keys = jax.random.split(k_emb, max_hops + 1)
    C = [0.1 * jax.random.normal(k, (vocab, embedding_dim), dtype=jnp.float32)
         for k in emb_keys]
    C = [c.at[PAD_token].set(0.0) for c in C]

    # Synthetic story; build m_story via embedding-bag sum (glue, plain JAX).
    story = jax.random.randint(k_story, (B, M, TOK), 0, vocab)
    m_story = jnp.stack(
        [jnp.sum(c[story], axis=2) for c in C], axis=0
    ).astype(jnp.float32)                                    # (H+1, B, M, E)

    query_vector = jax.random.normal(k_q, (B, embedding_dim), dtype=jnp.float32)
    global_pointer = jax.nn.sigmoid(
        jax.random.normal(k_gp, (B, M), dtype=jnp.float32))  # (B, M), in (0,1)

    prob_soft, prob_logits = external_knowledge_forward(
        m_story, global_pointer, query_vector, max_hops=max_hops)
    jax.block_until_ready((prob_soft, prob_logits))

    # Reference sees the same bf16-quantized m_story the kernel transports, so
    # the only residual differences are f32-accumulated MXU contractions and
    # the exact-reciprocal softmax (~1e-6 level).
    m_story_q = m_story.astype(jnp.bfloat16).astype(jnp.float32)
    ref_soft, ref_logits = reference_forward(
        m_story_q, global_pointer, query_vector, max_hops=max_hops)

    assert prob_soft.shape == ref_soft.shape
    assert prob_logits.shape == ref_logits.shape
    assert jnp.allclose(prob_soft, ref_soft, atol=1e-4, rtol=1e-4)
    assert jnp.allclose(prob_logits, ref_logits, atol=5e-4, rtol=5e-4)
    print("KERNEL_OK")
</pallas_src>

<mosaic_0001>
module attributes {stable_mosaic.version = 11 : i64} {
  func.func @ek_forward_kernel(%arg0: i32, %arg1: memref<4x2x8x32xbf16, #tpu.memory_space<vmem>>, %arg2: memref<2x8xf32, #tpu.memory_space<vmem>>, %arg3: memref<2x32xf32, #tpu.memory_space<vmem>>, %arg4: memref<2x8xf32, #tpu.memory_space<vmem>>, %arg5: memref<2x8xf32, #tpu.memory_space<vmem>>) attributes {dimension_semantics = [#tpu.dimension_semantics<parallel>], iteration_bounds = array<i64: 1>, scalar_prefetch = 0 : i64, scratch_operands = 0 : i64, tpu.core_type = #tpu.core_type<tc>, window_params = [{transform_indices = @transform_0, window_bounds = array<i64: 4, 2, 8, 32>}, {transform_indices = @transform_1, window_bounds = array<i64: 2, 8>}, {transform_indices = @transform_2, window_bounds = array<i64: 2, 32>}, {transform_indices = @transform_3, window_bounds = array<i64: 2, 8>}, {transform_indices = @transform_4, window_bounds = array<i64: 2, 8>}]} {
    %c0 = arith.constant 0 : index
    %c0_0 = arith.constant 0 : index
    %0 = vector.load %arg2[%c0, %c0_0] : memref<2x8xf32, #tpu.memory_space<vmem>>, vector<2x8xf32>
    %c0_1 = arith.constant 0 : index
    %c0_2 = arith.constant 0 : index
    %1 = vector.load %arg3[%c0_1, %c0_2] : memref<2x32xf32, #tpu.memory_space<vmem>>, vector<2x32xf32>
    %c0_3 = arith.constant 0 : index
    %c0_4 = arith.constant 0 : index
    %c0_5 = arith.constant 0 : index
    %c0_6 = arith.constant 0 : index
    %2 = vector.load %arg1[%c0_3, %c0_4, %c0_5, %c0_6] : memref<4x2x8x32xbf16, #tpu.memory_space<vmem>>, vector<1x2x8x32xbf16>
    %3 = vector.shape_cast %2 : vector<1x2x8x32xbf16> to vector<2x8x32xbf16>
    %4 = arith.extf %3 : vector<2x8x32xbf16> to vector<2x8x32xf32>
    %5 = vector.shape_cast %1 : vector<2x32xf32> to vector<2x1x32xf32>
    "tpu.trace_start"() <{level = 10 : i32, message = "bqe,bme->bqm"}> : () -> ()
    %cst = arith.constant dense<0.000000e+00> : vector<2x1x8xf32>
    %6 = tpu.matmul %5, %4, %cst {dimension_numbers = #tpu.dot_dimension_numbers<[2], [2], [1], [1], [0, 0, 0, 1, 1, 1], [0], [0]>} : vector<2x1x32xf32>, vector<2x8x32xf32>, vector<2x1x8xf32> -> vector<2x1x8xf32>
    "tpu.trace_stop"() : () -> ()
    %7 = vector.shape_cast %6 : vector<2x1x8xf32> to vector<2x8xf32>
    %8 = arith.mulf %0, %7 : vector<2x8xf32>
    %cst_7 = arith.constant dense<0xFF800000> : vector<2xf32>
    %9 = vector.multi_reduction <maximumf>, %8, %cst_7 [1] : vector<2x8xf32> to vector<2xf32>
    %10 = vector.shape_cast %9 : vector<2xf32> to vector<2x1xf32>
    %11 = vector.broadcast %10 : vector<2x1xf32> to vector<2x8xf32>
    %12 = arith.subf %8, %11 : vector<2x8xf32>
    %13 = math.exp %12 : vector<2x8xf32>
    %cst_8 = arith.constant dense<0.000000e+00> : vector<2xf32>
    %14 = vector.multi_reduction <add>, %13, %cst_8 [1] : vector<2x8xf32> to vector<2xf32>
    %15 = vector.shape_cast %14 : vector<2xf32> to vector<2x1xf32>
    %16 = tpu.reciprocal %15 : vector<2x1xf32> -> vector<2x1xf32>
    %17 = vector.broadcast %16 : vector<2x1xf32> to vector<2x8xf32>
    %18 = arith.mulf %13, %17 : vector<2x8xf32>
    %c1 = arith.constant 1 : index
    %c0_9 = arith.constant 0 : index
    %c0_10 = arith.constant 0 : index
    %c0_11 = arith.constant 0 : index
    %19 = vector.load %arg1[%c1, %c0_9, %c0_10, %c0_11] : memref<4x2x8x32xbf16, #tpu.memory_space<vmem>>, vector<1x2x8x32xbf16>
    %20 = vector.shape_cast %19 : vector<1x2x8x32xbf16> to vector<2x8x32xbf16>
    %21 = arith.extf %20 : vector<2x8x32xbf16> to vector<2x8x32xf32>
    %22 = arith.mulf %0, %18 : vector<2x8xf32>
    %23 = vector.shape_cast %22 : vector<2x8xf32> to vector<2x1x8xf32>
    "tpu.trace_start"() <{level = 10 : i32, message = "bqm,bme->bqe"}> : () -> ()
    %cst_12 = arith.constant dense<0.000000e+00> : vector<2x1x32xf32>
    %24 = tpu.matmul %23, %21, %cst_12 {dimension_numbers = #tpu.dot_dimension_numbers<[2], [1], [1], [2], [0, 0, 0, 1, 1, 2], [0], [0]>} : vector<2x1x8xf32>, vector<2x8x32xf32>, vector<2x1x32xf32> -> vector<2x1x32xf32>
    "tpu.trace_stop"() : () -> ()
    %25 = vector.shape_cast %24 : vector<2x1x32xf32> to vector<2x32xf32>
    %26 = arith.addf %1, %25 : vector<2x32xf32>
    %c1_13 = arith.constant 1 : index
    %c0_14 = arith.constant 0 : index
    %c0_15 = arith.constant 0 : index
    %c0_16 = arith.constant 0 : index
    %27 = vector.load %arg1[%c1_13, %c0_14, %c0_15, %c0_16] : memref<4x2x8x32xbf16, #tpu.memory_space<vmem>>, vector<1x2x8x32xbf16>
    %28 = vector.shape_cast %27 : vector<1x2x8x32xbf16> to vector<2x8x32xbf16>
    %29 = arith.extf %28 : vector<2x8x32xbf16> to vector<2x8x32xf32>
    %30 = vector.shape_cast %26 : vector<2x32xf32> to vector<2x1x32xf32>
    "tpu.trace_start"() <{level = 10 : i32, message = "bqe,bme->bqm"}> : () -> ()
    %cst_17 = arith.constant dense<0.000000e+00> : vector<2x1x8xf32>
    %31 = tpu.matmul %30, %29, %cst_17 {dimension_numbers = #tpu.dot_dimension_numbers<[2], [2], [1], [1], [0, 0, 0, 1, 1, 1], [0], [0]>} : vector<2x1x32xf32>, vector<2x8x32xf32>, vector<2x1x8xf32> -> vector<2x1x8xf32>
    "tpu.trace_stop"() : () -> ()
    %32 = vector.shape_cast %31 : vector<2x1x8xf32> to vector<2x8xf32>
    %33 = arith.mulf %0, %32 : vector<2x8xf32>
    %cst_18 = arith.constant dense<0xFF800000> : vector<2xf32>
    %34 = vector.multi_reduction <maximumf>, %33, %cst_18 [1] : vector<2x8xf32> to vector<2xf32>
    %35 = vector.shape_cast %34 : vector<2xf32> to vector<2x1xf32>
    %36 = vector.broadcast %35 : vector<2x1xf32> to vector<2x8xf32>
    %37 = arith.subf %33, %36 : vector<2x8xf32>
    %38 = math.exp %37 : vector<2x8xf32>
    %cst_19 = arith.constant dense<0.000000e+00> : vector<2xf32>
    %39 = vector.multi_reduction <add>, %38, %cst_19 [1] : vector<2x8xf32> to vector<2xf32>
    %40 = vector.shape_cast %39 : vector<2xf32> to vector<2x1xf32>
    %41 = tpu.reciprocal %40 : vector<2x1xf32> -> vector<2x1xf32>
    %42 = vector.broadcast %41 : vector<2x1xf32> to vector<2x8xf32>
    %43 = arith.mulf %38, %42 : vector<2x8xf32>
    %c2 = arith.constant 2 : index
    %c0_20 = arith.constant 0 : index
    %c0_21 = arith.constant 0 : index
    %c0_22 = arith.constant 0 : index
    %44 = vector.load %arg1[%c2, %c0_20, %c0_21, %c0_22] : memref<4x2x8x32xbf16, #tpu.memory_space<vmem>>, vector<1x2x8x32xbf16>
    %45 = vector.shape_cast %44 : vector<1x2x8x32xbf16> to vector<2x8x32xbf16>
    %46 = arith.extf %45 : vector<2x8x32xbf16> to vector<2x8x32xf32>
    %47 = arith.mulf %0, %43 : vector<2x8xf32>
    %48 = vector.shape_cast %47 : vector<2x8xf32> to vector<2x1x8xf32>
    "tpu.trace_start"() <{level = 10 : i32, message = "bqm,bme->bqe"}> : () -> ()
    %cst_23 = arith.constant dense<0.000000e+00> : vector<2x1x32xf32>
    %49 = tpu.matmul %48, %46, %cst_23 {dimension_numbers = #tpu.dot_dimension_numbers<[2], [1], [1], [2], [0, 0, 0, 1, 1, 2], [0], [0]>} : vector<2x1x8xf32>, vector<2x8x32xf32>, vector<2x1x32xf32> -> vector<2x1x32xf32>
    "tpu.trace_stop"() : () -> ()
    %50 = vector.shape_cast %49 : vector<2x1x32xf32> to vector<2x32xf32>
    %51 = arith.addf %26, %50 : vector<2x32xf32>
    %c2_24 = arith.constant 2 : index
    %c0_25 = arith.constant 0 : index
    %c0_26 = arith.constant 0 : index
    %c0_27 = arith.constant 0 : index
    %52 = vector.load %arg1[%c2_24, %c0_25, %c0_26, %c0_27] : memref<4x2x8x32xbf16, #tpu.memory_space<vmem>>, vector<1x2x8x32xbf16>
    %53 = vector.shape_cast %52 : vector<1x2x8x32xbf16> to vector<2x8x32xbf16>
    %54 = arith.extf %53 : vector<2x8x32xbf16> to vector<2x8x32xf32>
    %55 = vector.shape_cast %51 : vector<2x32xf32> to vector<2x1x32xf32>
    "tpu.trace_start"() <{level = 10 : i32, message = "bqe,bme->bqm"}> : () -> ()
    %cst_28 = arith.constant dense<0.000000e+00> : vector<2x1x8xf32>
    %56 = tpu.matmul %55, %54, %cst_28 {dimension_numbers = #tpu.dot_dimension_numbers<[2], [2], [1], [1], [0, 0, 0, 1, 1, 1], [0], [0]>} : vector<2x1x32xf32>, vector<2x8x32xf32>, vector<2x1x8xf32> -> vector<2x1x8xf32>
    "tpu.trace_stop"() : () -> ()
    %57 = vector.shape_cast %56 : vector<2x1x8xf32> to vector<2x8xf32>
    %58 = arith.mulf %0, %57 : vector<2x8xf32>
    %cst_29 = arith.constant dense<0xFF800000> : vector<2xf32>
    %59 = vector.multi_reduction <maximumf>, %58, %cst_29 [1] : vector<2x8xf32> to vector<2xf32>
    %60 = vector.shape_cast %59 : vector<2xf32> to vector<2x1xf32>
    %61 = vector.broadcast %60 : vector<2x1xf32> to vector<2x8xf32>
    %62 = arith.subf %58, %61 : vector<2x8xf32>
    %63 = math.exp %62 : vector<2x8xf32>
    %cst_30 = arith.constant dense<0.000000e+00> : vector<2xf32>
    %64 = vector.multi_reduction <add>, %63, %cst_30 [1] : vector<2x8xf32> to vector<2xf32>
    %65 = vector.shape_cast %64 : vector<2xf32> to vector<2x1xf32>
    %66 = tpu.reciprocal %65 : vector<2x1xf32> -> vector<2x1xf32>
    %67 = vector.broadcast %66 : vector<2x1xf32> to vector<2x8xf32>
    %68 = arith.mulf %63, %67 : vector<2x8xf32>
    %c0_31 = arith.constant 0 : index
    %c0_32 = arith.constant 0 : index
    %69 = vector.load %arg4[%c0_31, %c0_32] : memref<2x8xf32, #tpu.memory_space<vmem>>, vector<2x8xf32>
    tpu.vector_store %arg4[%c0_31, %c0_32], %68 {strides = array<i32>} : memref<2x8xf32, #tpu.memory_space<vmem>>, vector<2x8xf32>,
    %c0_33 = arith.constant 0 : index
    %c0_34 = arith.constant 0 : index
    %70 = vector.load %arg5[%c0_33, %c0_34] : memref<2x8xf32, #tpu.memory_space<vmem>>, vector<2x8xf32>
    tpu.vector_store %arg5[%c0_33, %c0_34], %58 {strides = array<i32>} : memref<2x8xf32, #tpu.memory_space<vmem>>, vector<2x8xf32>,
    return
  }
  func.func @transform_0(%arg0: i32) -> (i32, i32, i32, i32) {
    %c0_i32 = arith.constant 0 : i32
    %c0_i32_0 = arith.constant 0 : i32
    %c0_i32_1 = arith.constant 0 : i32
    %c0_i32_2 = arith.constant 0 : i32
    return %c0_i32, %arg0, %c0_i32_0, %c0_i32_1 : i32, i32, i32, i32
  }
  func.func @transform_1(%arg0: i32) -> (i32, i32) {
    %c0_i32 = arith.constant 0 : i32
    %c0_i32_0 = arith.constant 0 : i32
    return %arg0, %c0_i32 : i32, i32
  }
  func.func @transform_2(%arg0: i32) -> (i32, i32) {
    %c0_i32 = arith.constant 0 : i32
    %c0_i32_0 = arith.constant 0 : i32
    return %arg0, %c0_i32 : i32, i32
  }
  func.func @transform_3(%arg0: i32) -> (i32, i32) {
    %c0_i32 = arith.constant 0 : i32
    %c0_i32_0 = arith.constant 0 : i32
    return %arg0, %c0_i32 : i32, i32
  }
  func.func @transform_4(%arg0: i32) -> (i32, i32) {
    %c0_i32 = arith.constant 0 : i32
    %c0_i32_0 = arith.constant 0 : i32
    return %arg0, %c0_i32 : i32, i32
  }
}

</mosaic_0001>

<llo_original>
// kernel: tpu_custom_call.1
$region0: #{tpu_custom_call.1}
  #allocation0 [shape = 'u32[]', space=smem, size = 0x4, offset = 0x4, fixed_abs, tag = 'smem constant byte address 0x4 - core index']
  #allocation1 [shape = 'u32[72,128]{1,0:T(1,128)}', space=vmem, size = 0x9000, scoped, tag = 'internal scratch']
  %s0 = inlined_call_operand.hbm [shape: bf16[4,2,8,32], index: 0, kind: input, shape index: {}]
  %s1 = inlined_call_operand.hbm [shape: f32[2,8], index: 1, kind: input, shape index: {}]
  %s2 = inlined_call_operand.hbm [shape: f32[2,32], index: 2, kind: input, shape index: {}]
  %s3 = inlined_call_operand.hbm [shape: f32[2,8], index: 3, kind: output, shape index: {0}]
  %s4 = inlined_call_operand.hbm [shape: f32[2,8], index: 4, kind: output, shape index: {1}]
  %5 = xla_tuple %s3, %s4
  %s6 = sld [smem:[#allocation0]]
  $region42: #{tpu_custom_call.1} parent=0
    _
  %s8 = ssub.s32 1, %s6
  %s9 = scalar_select 0, %s8, %s6
  $region1: #{tpu_custom_call.1} parent=0
    #allocation2 [shape = 'u8[16384]{0}', space=vmem, size = 0x4000, scoped, tag = 'input window, operand 0, single buffered']
    #allocation3 [shape = 's32[1]{0}', space=sflag, size = 0x4, scoped, tag = 'scoped memory for tpu_custom_call.1']
    #allocation4 [shape = 's32[1]{0}', space=sflag, size = 0x4, scoped, tag = 'scoped memory for tpu_custom_call.1']
    #allocation5 [shape = 'u8[1024]{0}', space=vmem, size = 0x400, scoped, tag = 'input window, operand 1, single buffered']
    #allocation6 [shape = 's32[1]{0}', space=sflag, size = 0x4, scoped, tag = 'scoped memory for tpu_custom_call.1']
    #allocation7 [shape = 'u8[1024]{0}', space=vmem, size = 0x400, scoped, tag = 'input window, operand 2, single buffered']
    #allocation8 [shape = 'u8[1024]{0}', space=vmem, size = 0x400, scoped, tag = 'output window, operand 0, single buffered']
    #allocation9 [shape = 'u8[1024]{0}', space=vmem, size = 0x400, scoped, tag = 'output window, operand 1, single buffered']
    #allocation10 [shape = 's32[1]{0}', space=sflag, size = 0x4, scoped, tag = 'scoped memory for tpu_custom_call.1']
    %10 = vsyncpa [#allocation3], 0
    %11 = vsyncpa [#allocation6], 0
    %12 = vsyncpa [#allocation4], 0
    %13 = vsyncpa [#allocation10], 0
    // Predicated region
    $region2: #{tpu_custom_call.1} parent=1 // pred_check
      _
    $region3: #{tpu_custom_call.1} parent=1 // pred_check_branch
      %15 = sbr.rel (0) target = $region5
    $region4: #{tpu_custom_call.1} parent=1 // pred_region
      %17 = vsyncadd [#allocation3], 0
      %s18 = sshll.u32 %s0, 4
      %s19 = int_to_ptr.hbm [resolvable:$true] %s18
      %s20 = sshll.u32 [#allocation2], 4
      %s21 = int_to_ptr.vmem [resolvable:$true] %s20
      %26 = dma.hbm_to_vmem [thread:$0]  %s19, 512, %s21, [#allocation3], 64, 64, 4
    $region5: #{tpu_custom_call.1} parent=1 // pred_fallthru
      _
    // Predicated region
    $region6: #{tpu_custom_call.1} parent=1 // pred_check
      _
    $region7: #{tpu_custom_call.1} parent=1 // pred_check_branch
      %28 = sbr.rel (0) target = $region9
    $region8: #{tpu_custom_call.1} parent=1 // pred_region
      %30 = vsyncadd [#allocation6], 0
      %s32 = sshll.u32 %s1, 4
      %s33 = int_to_ptr.hbm [resolvable:$true] %s32
      %s34 = sshll.u32 [#allocation5], 4
      %s35 = int_to_ptr.vmem [resolvable:$true] %s34
      %37 = dma.hbm_to_vmem [thread:$0]  %s33, 32, %s35, [#allocation6]
    $region9: #{tpu_custom_call.1} parent=1 // pred_fallthru
      _
    // Predicated region
    $region10: #{tpu_custom_call.1} parent=1 // pred_check
      _
    $region11: #{tpu_custom_call.1} parent=1 // pred_check_branch
      %39 = sbr.rel (0) target = $region13
    $region12: #{tpu_custom_call.1} parent=1 // pred_region
      %41 = vsyncadd [#allocation6], 0
      %s43 = sshll.u32 %s2, 4
      %s44 = int_to_ptr.hbm [resolvable:$true] %s43
      %s45 = sshll.u32 [#allocation7], 4
      %s46 = int_to_ptr.vmem [resolvable:$true] %s45
      %48 = dma.hbm_to_vmem [thread:$0]  %s44, 32, %s46, [#allocation6]
    $region13: #{tpu_custom_call.1} parent=1 // pred_fallthru
      _
    // Predicated region
    $region14: #{tpu_custom_call.1} parent=1 // pred_check
      _
    $region15: #{tpu_custom_call.1} parent=1 // pred_check_branch
      %50 = sbr.rel (0) target = $region17
    $region16: #{tpu_custom_call.1} parent=1 // pred_region
      %52 = dma.done [#allocation3], 512
    $region17: #{tpu_custom_call.1} parent=1 // pred_fallthru
      _
    // Predicated region
    $region18: #{tpu_custom_call.1} parent=1 // pred_check
      _
    $region19: #{tpu_custom_call.1} parent=1 // pred_check_branch
      %54 = sbr.rel (0) target = $region21
    $region20: #{tpu_custom_call.1} parent=1 // pred_region
      %56 = dma.done [#allocation6], 32
    $region21: #{tpu_custom_call.1} parent=1 // pred_fallthru
      _
    // Predicated region
    $region22: #{tpu_custom_call.1} parent=1 // pred_check
      _
    $region23: #{tpu_custom_call.1} parent=1 // pred_check_branch
      %58 = sbr.rel (0) target = $region25
    $region24: #{tpu_custom_call.1} parent=1 // pred_region
      %60 = dma.done [#allocation6], 32
    $region25: #{tpu_custom_call.1} parent=1 // pred_fallthru
      _
    %v61 = vld [vmem:[#allocation5] sm:$0x3]
    %v62 = vld [vmem:[#allocation7] sm:$0x3]
    %v63 = vld [vmem:[#allocation2] sm:$0xf]
    %v64 = vld [vmem:[#allocation2 + $0x4] sm:$0xf]
    %v65 = vunpack.c.l.bf16 %v63
    %v66 = vunpack.c.l.bf16 %v64
    %v68 = vrot.slane %v62, 1
    %vm69 = vcmask 261120
    %v70 = vsel %vm69, %v62, 0
    %v73 = vsel %vm69, %v65, 0
    %75 = vmatpush.xpose.msra.mxu0 0.0
    %76 = vmatpush.xpose.msra.mxu0 0.0
    %77 = vmatpush.xpose.msra.mxu0 0.0
    %78 = vmatpush.xpose.msra.mxu0 0.0
    %79 = vmatpush.xpose.msra.mxu0 0.0
    %80 = vmatpush.xpose.msra.mxu0 0.0
    %81 = vmatpush.xpose.msra.mxu0 0.0
    %82 = vmatpush.xpose.msra.mxu0 0.0
    %83 = vmatpush.xpose.msra.mxu0 0.0
    %84 = vmatpush.xpose.msra.mxu0 0.0
    %85 = vmatpush.xpose.msra.mxu0 0.0
    %86 = vmatpush.xpose.msra.mxu0 0.0
    %87 = vmatpush.xpose.msra.mxu0 0.0
    %88 = vmatpush.xpose.msra.mxu0 0.0
    %89 = vmatpush.xpose.msra.mxu0 0.0
    %90 = vmatpush.xpose.msra.mxu0 %v73
    %91 = vmatmul.f32.gmra.mxu0 %v70
    %v92 = vpop.f32.mrf.mxu0
    %v93 = vadd.f32 0.0, %v92
    %94 = vdwg.mxu0
    %v95 = vsel %vm69, %v68, 0
    %v98 = vsel %vm69, %v66, 0
    %100 = vmatpush.xpose.msra.mxu0 0.0
    %101 = vmatpush.xpose.msra.mxu0 0.0
    %102 = vmatpush.xpose.msra.mxu0 0.0
    %103 = vmatpush.xpose.msra.mxu0 0.0
    %104 = vmatpush.xpose.msra.mxu0 0.0
    %105 = vmatpush.xpose.msra.mxu0 0.0
    %106 = vmatpush.xpose.msra.mxu0 0.0
    %107 = vmatpush.xpose.msra.mxu0 0.0
    %108 = vmatpush.xpose.msra.mxu0 0.0
    %109 = vmatpush.xpose.msra.mxu0 0.0
    %110 = vmatpush.xpose.msra.mxu0 0.0
    %111 = vmatpush.xpose.msra.mxu0 0.0
    %112 = vmatpush.xpose.msra.mxu0 0.0
    %113 = vmatpush.xpose.msra.mxu0 0.0
    %114 = vmatpush.xpose.msra.mxu0 0.0
    %115 = vmatpush.xpose.msra.mxu0 %v98
    %116 = vmatmul.f32.gmra.mxu0 %v95
    %v117 = vpop.f32.mrf.mxu0
    %v118 = vadd.f32 0.0, %v117
    %119 = vdwg.mxu0
    %v122 = vrot.slane %v118, 7
    %vm123 = vcmask 1041409
    %v124 = vsel %vm123, %v122, %v93
    %v126 = vmul.f32 %v61, %v124
    %vm127 = vcmask 58368
    %v128 = vsel %vm127, %v126, -inf
    %129 = vmax.xlane.f32.xlu0 %v128
    %v130 = vpop.xlane.xlu0 %129
    %v131 = vsub.f32 %v126, %v130
    %v132 = vmul.f32 %v131, 1.442695
    %v133 = vpow.pop %v132
    %v134 = vsel %vm127, %v133, 0.0
    %135 = vadd.xlane.f32.xlu0 %v134
    %v136 = vpop.xlane.xlu0 %135
    %v137 = vrcp.pop %v136
    %v138 = vmul.f32 %v136, %v137
    %v139 = vsub.f32 1.0, %v138
    %v140 = vmul.f32 %v137, %v139
    %v141 = vadd.f32 %v137, %v140
    %vm142 = vweird.f32 %v136
    %vm143 = vweird.f32 %v137
    %vm144 = vmor %vm142, %vm143
    %v145 = vsel %vm144, %v137, %v141
    %v146 = vand.u32 2147483647, %v136
    %vm147 = vcmp.eq.f32.partialorder %v146, 8.507059e+37
    %v148 = vand.u32 %v136, 2147483648
    %v149 = vor.u32 1.1754944e-38, %v148
    %v150 = vsel %vm147, %v149, %v145
    %v151 = vmul.f32 %v133, %v150
    %s152 = scalar_lea.vmem [#allocation2], 8
    %v153 = vld [vmem:[%s152] sm:$0xf]
    %v154 = vld [vmem:[%s152 + $0x4] sm:$0xf]
    %v155 = vunpack.c.l.bf16 %v153
    %v156 = vunpack.c.l.bf16 %v154
    %v157 = vmul.f32 %v61, %v151
    %v159 = vrot.slane %v157, 1
    %vm160 = vcmask 64512
    %v161 = vsel %vm160, %v157, 0
    %163 = vmatpush.msra.mxu0 0.0
    %164 = vmatpush.msra.mxu0 0.0
    %165 = vmatpush.msra.mxu0 0.0
    %166 = vmatpush.msra.mxu0 0.0
    %167 = vmatpush.msra.mxu0 0.0
    %168 = vmatpush.msra.mxu0 0.0
    %169 = vmatpush.msra.mxu0 0.0
    %170 = vmatpush.msra.mxu0 0.0
    %171 = vmatpush.msra.mxu0 0.0
    %172 = vmatpush.msra.mxu0 0.0
    %173 = vmatpush.msra.mxu0 0.0
    %174 = vmatpush.msra.mxu0 0.0
    %175 = vmatpush.msra.mxu0 0.0
    %176 = vmatpush.msra.mxu0 0.0
    %177 = vmatpush.msra.mxu0 0.0
    %178 = vmatpush.msra.mxu0 %v155
    %179 = vmatmul.f32.gmra.mxu0 %v161
    %v180 = vpop.f32.mrf.mxu0
    %v181 = vadd.f32 0.0, %v180
    %182 = vdwg.mxu0
    %v183 = vsel %vm160, %v159, 0
    %185 = vmatpush.msra.mxu0 0.0
    %186 = vmatpush.msra.mxu0 0.0
    %187 = vmatpush.msra.mxu0 0.0
    %188 = vmatpush.msra.mxu0 0.0
    %189 = vmatpush.msra.mxu0 0.0
    %190 = vmatpush.msra.mxu0 0.0
    %191 = vmatpush.msra.mxu0 0.0
    %192 = vmatpush.msra.mxu0 0.0
    %193 = vmatpush.msra.mxu0 0.0
    %194 = vmatpush.msra.mxu0 0.0
    %195 = vmatpush.msra.mxu0 0.0
    %196 = vmatpush.msra.mxu0 0.0
    %197 = vmatpush.msra.mxu0 0.0
    %198 = vmatpush.msra.mxu0 0.0
    %199 = vmatpush.msra.mxu0 0.0
    %200 = vmatpush.msra.mxu0 %v156
    %201 = vmatmul.f32.gmra.mxu0 %v183
    %v202 = vpop.f32.mrf.mxu0
    %v203 = vadd.f32 0.0, %v202
    %204 = vdwg.mxu0
    %v207 = vrot.slane %v203, 7
    %v208 = vsel %vm123, %v207, %v181
    %v210 = vadd.f32 %v62, %v208
    %v211 = vld [vmem:[%s152] sm:$0xf]
    %v212 = vld [vmem:[%s152 + $0x4] sm:$0xf]
    %v213 = vunpack.c.l.bf16 %v211
    %v214 = vunpack.c.l.bf16 %v212
    %v216 = vrot.slane %v210, 1
    %v217 = vsel %vm69, %v210, 0
    %v220 = vsel %vm69, %v213, 0
    %222 = vmatpush.xpose.msra.mxu0 0.0
    %223 = vmatpush.xpose.msra.mxu0 0.0
    %224 = vmatpush.xpose.msra.mxu0 0.0
    %225 = vmatpush.xpose.msra.mxu0 0.0
    %226 = vmatpush.xpose.msra.mxu0 0.0
    %227 = vmatpush.xpose.msra.mxu0 0.0
    %228 = vmatpush.xpose.msra.mxu0 0.0
    %229 = vmatpush.xpose.msra.mxu0 0.0
    %230 = vmatpush.xpose.msra.mxu0 0.0
    %231 = vmatpush.xpose.msra.mxu0 0.0
    %232 = vmatpush.xpose.msra.mxu0 0.0
    %233 = vmatpush.xpose.msra.mxu0 0.0
    %234 = vmatpush.xpose.msra.mxu0 0.0
    %235 = vmatpush.xpose.msra.mxu0 0.0
    %236 = vmatpush.xpose.msra.mxu0 0.0
    %237 = vmatpush.xpose.msra.mxu0 %v220
    %238 = vmatmul.f32.gmra.mxu0 %v217
    %v239 = vpop.f32.mrf.mxu0
    %v240 = vadd.f32 0.0, %v239
    %241 = vdwg.mxu0
    %v242 = vsel %vm69, %v216, 0
    %v245 = vsel %vm69, %v214, 0
    %247 = vmatpush.xpose.msra.mxu0 0.0
    %248 = vmatpush.xpose.msra.mxu0 0.0
    %249 = vmatpush.xpose.msra.mxu0 0.0
    %250 = vmatpush.xpose.msra.mxu0 0.0
    %251 = vmatpush.xpose.msra.mxu0 0.0
    %252 = vmatpush.xpose.msra.mxu0 0.0
    %253 = vmatpush.xpose.msra.mxu0 0.0
    %254 = vmatpush.xpose.msra.mxu0 0.0
    %255 = vmatpush.xpose.msra.mxu0 0.0
    %256 = vmatpush.xpose.msra.mxu0 0.0
    %257 = vmatpush.xpose.msra.mxu0 0.0
    %258 = vmatpush.xpose.msra.mxu0 0.0
    %259 = vmatpush.xpose.msra.mxu0 0.0
    %260 = vmatpush.xpose.msra.mxu0 0.0
    %261 = vmatpush.xpose.msra.mxu0 0.0
    %262 = vmatpush.xpose.msra.mxu0 %v245
    %263 = vmatmul.f32.gmra.mxu0 %v242
    %v264 = vpop.f32.mrf.mxu0
    %v265 = vadd.f32 0.0, %v264
    %266 = vdwg.mxu0
    %v269 = vrot.slane %v265, 7
    %v270 = vsel %vm123, %v269, %v240
    %v272 = vmul.f32 %v61, %v270
    %v273 = vsel %vm127, %v272, -inf
    %274 = vmax.xlane.f32.xlu0 %v273
    %v275 = vpop.xlane.xlu0 %274
    %v276 = vsub.f32 %v272, %v275
    %v277 = vmul.f32 %v276, 1.442695
    %v278 = vpow.pop %v277
    %v279 = vsel %vm127, %v278, 0.0
    %280 = vadd.xlane.f32.xlu0 %v279
    %v281 = vpop.xlane.xlu0 %280
    %v282 = vrcp.pop %v281
    %v283 = vmul.f32 %v281, %v282
    %v284 = vsub.f32 1.0, %v283
    %v285 = vmul.f32 %v282, %v284
    %v286 = vadd.f32 %v282, %v285
    %vm287 = vweird.f32 %v281
    %vm288 = vweird.f32 %v282
    %vm289 = vmor %vm287, %vm288
    %v290 = vsel %vm289, %v282, %v286
    %v291 = vand.u32 2147483647, %v281
    %vm292 = vcmp.eq.f32.partialorder %v291, 8.507059e+37
    %v293 = vand.u32 %v281, 2147483648
    %v294 = vor.u32 1.1754944e-38, %v293
    %v295 = vsel %vm292, %v294, %v290
    %v296 = vmul.f32 %v278, %v295
    %s297 = scalar_lea.vmem [#allocation2], 16
    %v298 = vld [vmem:[%s297] sm:$0xf]
    %v299 = vld [vmem:[%s297 + $0x4] sm:$0xf]
    %v300 = vunpack.c.l.bf16 %v298
    %v301 = vunpack.c.l.bf16 %v299
    %v302 = vmul.f32 %v61, %v296
    %v304 = vrot.slane %v302, 1
    %v305 = vsel %vm160, %v302, 0
    %307 = vmatpush.msra.mxu0 0.0
    %308 = vmatpush.msra.mxu0 0.0
    %309 = vmatpush.msra.mxu0 0.0
    %310 = vmatpush.msra.mxu0 0.0
    %311 = vmatpush.msra.mxu0 0.0
    %312 = vmatpush.msra.mxu0 0.0
    %313 = vmatpush.msra.mxu0 0.0
    %314 = vmatpush.msra.mxu0 0.0
    %315 = vmatpush.msra.mxu0 0.0
    %316 = vmatpush.msra.mxu0 0.0
    %317 = vmatpush.msra.mxu0 0.0
    %318 = vmatpush.msra.mxu0 0.0
    %319 = vmatpush.msra.mxu0 0.0
    %320 = vmatpush.msra.mxu0 0.0
    %321 = vmatpush.msra.mxu0 0.0
    %322 = vmatpush.msra.mxu0 %v300
    %323 = vmatmul.f32.gmra.mxu0 %v305
    %v324 = vpop.f32.mrf.mxu0
    %v325 = vadd.f32 0.0, %v324
    %326 = vdwg.mxu0
    %v327 = vsel %vm160, %v304, 0
    %329 = vmatpush.msra.mxu0 0.0
    %330 = vmatpush.msra.mxu0 0.0
    %331 = vmatpush.msra.mxu0 0.0
    %332 = vmatpush.msra.mxu0 0.0
    %333 = vmatpush.msra.mxu0 0.0
    %334 = vmatpush.msra.mxu0 0.0
    %335 = vmatpush.msra.mxu0 0.0
    %336 = vmatpush.msra.mxu0 0.0
    %337 = vmatpush.msra.mxu0 0.0
    %338 = vmatpush.msra.mxu0 0.0
    %339 = vmatpush.msra.mxu0 0.0
    %340 = vmatpush.msra.mxu0 0.0
    %341 = vmatpush.msra.mxu0 0.0
    %342 = vmatpush.msra.mxu0 0.0
    %343 = vmatpush.msra.mxu0 0.0
    %344 = vmatpush.msra.mxu0 %v301
    %345 = vmatmul.f32.gmra.mxu0 %v327
    %v346 = vpop.f32.mrf.mxu0
    %v347 = vadd.f32 0.0, %v346
    %348 = vdwg.mxu0
    %v351 = vrot.slane %v347, 7
    %v352 = vsel %vm123, %v351, %v325
    %v354 = vadd.f32 %v210, %v352
    %v355 = vld [vmem:[%s297] sm:$0xf]
    %v356 = vld [vmem:[%s297 + $0x4] sm:$0xf]
    %v357 = vunpack.c.l.bf16 %v355
    %v358 = vunpack.c.l.bf16 %v356
    %v360 = vrot.slane %v354, 1
    %v361 = vsel %vm69, %v354, 0
    %v364 = vsel %vm69, %v357, 0
    %366 = vmatpush.xpose.msra.mxu0 0.0
    %367 = vmatpush.xpose.msra.mxu0 0.0
    %368 = vmatpush.xpose.msra.mxu0 0.0
    %369 = vmatpush.xpose.msra.mxu0 0.0
    %370 = vmatpush.xpose.msra.mxu0 0.0
    %371 = vmatpush.xpose.msra.mxu0 0.0
    %372 = vmatpush.xpose.msra.mxu0 0.0
    %373 = vmatpush.xpose.msra.mxu0 0.0
    %374 = vmatpush.xpose.msra.mxu0 0.0
    %375 = vmatpush.xpose.msra.mxu0 0.0
    %376 = vmatpush.xpose.msra.mxu0 0.0
    %377 = vmatpush.xpose.msra.mxu0 0.0
    %378 = vmatpush.xpose.msra.mxu0 0.0
    %379 = vmatpush.xpose.msra.mxu0 0.0
    %380 = vmatpush.xpose.msra.mxu0 0.0
    %381 = vmatpush.xpose.msra.mxu0 %v364
    %382 = vmatmul.f32.gmra.mxu0 %v361
    %v383 = vpop.f32.mrf.mxu0
    %v384 = vadd.f32 0.0, %v383
    %385 = vdwg.mxu0
    %v386 = vsel %vm69, %v360, 0
    %v389 = vsel %vm69, %v358, 0
    %391 = vmatpush.xpose.msra.mxu0 0.0
    %392 = vmatpush.xpose.msra.mxu0 0.0
    %393 = vmatpush.xpose.msra.mxu0 0.0
    %394 = vmatpush.xpose.msra.mxu0 0.0
    %395 = vmatpush.xpose.msra.mxu0 0.0
    %396 = vmatpush.xpose.msra.mxu0 0.0
    %397 = vmatpush.xpose.msra.mxu0 0.0
    %398 = vmatpush.xpose.msra.mxu0 0.0
    %399 = vmatpush.xpose.msra.mxu0 0.0
    %400 = vmatpush.xpose.msra.mxu0 0.0
    %401 = vmatpush.xpose.msra.mxu0 0.0
    %402 = vmatpush.xpose.msra.mxu0 0.0
    %403 = vmatpush.xpose.msra.mxu0 0.0
    %404 = vmatpush.xpose.msra.mxu0 0.0
    %405 = vmatpush.xpose.msra.mxu0 0.0
    %406 = vmatpush.xpose.msra.mxu0 %v389
    %407 = vmatmul.f32.gmra.mxu0 %v386
    %v408 = vpop.f32.mrf.mxu0
    %v409 = vadd.f32 0.0, %v408
    %410 = vdwg.mxu0
    %v413 = vrot.slane %v409, 7
    %v414 = vsel %vm123, %v413, %v384
    %v416 = vmul.f32 %v61, %v414
    %v417 = vsel %vm127, %v416, -inf
    %418 = vmax.xlane.f32.xlu0 %v417
    %v419 = vpop.xlane.xlu0 %418
    %v420 = vsub.f32 %v416, %v419
    %v421 = vmul.f32 %v420, 1.442695
    %v422 = vpow.pop %v421
    %v423 = vsel %vm127, %v422, 0.0
    %424 = vadd.xlane.f32.xlu0 %v423
    %v425 = vpop.xlane.xlu0 %424
    %v426 = vrcp.pop %v425
    %v427 = vmul.f32 %v425, %v426
    %v428 = vsub.f32 1.0, %v427
    %v429 = vmul.f32 %v426, %v428
    %v430 = vadd.f32 %v426, %v429
    %vm431 = vweird.f32 %v425
    %vm432 = vweird.f32 %v426
    %vm433 = vmor %vm431, %vm432
    %v434 = vsel %vm433, %v426, %v430
    %v435 = vand.u32 2147483647, %v425
    %vm436 = vcmp.eq.f32.partialorder %v435, 8.507059e+37
    %v437 = vand.u32 %v425, 2147483648
    %v438 = vor.u32 1.1754944e-38, %v437
    %v439 = vsel %vm436, %v438, %v434
    %v440 = vmul.f32 %v422, %v439
    %441 = vst.msk [vmem:[#allocation8] sm:$0x3] %vm127, %v440
    %442 = vst.msk [vmem:[#allocation9] sm:$0x3] %vm127, %v416
    // Predicated region
    $region26: #{tpu_custom_call.1} parent=1 // pred_check
      _
    $region27: #{tpu_custom_call.1} parent=1 // pred_check_branch
      %444 = sbr.rel (0) target = $region29
    $region28: #{tpu_custom_call.1} parent=1 // pred_region
      %446 = vsyncadd [#allocation4], 0
      %s448 = sshll.u32 [#allocation8], 4
      %s449 = int_to_ptr.vmem [resolvable:$true] %s448
      %s450 = sshll.u32 %s3, 4
      %s451 = int_to_ptr.hbm [resolvable:$true] %s450
      %453 = dma.vmem_to_hbm [thread:$0]  %s449, 32, %s451, [#allocation4]
    $region29: #{tpu_custom_call.1} parent=1 // pred_fallthru
      _
    // Predicated region
    $region30: #{tpu_custom_call.1} parent=1 // pred_check
      _
    $region31: #{tpu_custom_call.1} parent=1 // pred_check_branch
      %455 = sbr.rel (0) target = $region33
    $region32: #{tpu_custom_call.1} parent=1 // pred_region
      %457 = vsyncadd [#allocation10], 0
      %s459 = sshll.u32 [#allocation9], 4
      %s460 = int_to_ptr.vmem [resolvable:$true] %s459
      %s461 = sshll.u32 %s4, 4
      %s462 = int_to_ptr.hbm [resolvable:$true] %s461
      %464 = dma.vmem_to_hbm [thread:$0]  %s460, 32, %s462, [#allocation10]
    $region33: #{tpu_custom_call.1} parent=1 // pred_fallthru
      _
    // Predicated region
    $region34: #{tpu_custom_call.1} parent=1 // pred_check
      _
    $region35: #{tpu_custom_call.1} parent=1 // pred_check_branch
      %466 = sbr.rel (0) target = $region37
    $region36: #{tpu_custom_call.1} parent=1 // pred_region
      %468 = dma.done [#allocation4], 32
    $region37: #{tpu_custom_call.1} parent=1 // pred_fallthru
      _
    // Predicated region
    $region38: #{tpu_custom_call.1} parent=1 // pred_check
      _
    $region39: #{tpu_custom_call.1} parent=1 // pred_check_branch
      %470 = sbr.rel (0) target = $region41
    $region40: #{tpu_custom_call.1} parent=1 // pred_region
      %472 = dma.done [#allocation10], 32
    $region41: #{tpu_custom_call.1} parent=1 // pred_fallthru
      _
    %473 = vsyncpa [#allocation3], 1
    %474 = vsyncpa [#allocation6], 1
    %475 = vsyncpa [#allocation4], 1
    %476 = vsyncpa [#allocation10], 1

</llo_original>
